<compile_context>
chip_gen: v6e
topology: v6e:2x2x1
jax: 0.10.0
libtpu: 0.0.40
codegen_flags: <defaults>
</compile_context>

<pallas_src>
import jax
import jax.numpy as jnp
from jax.experimental import pallas as pl
from jax.experimental.pallas import tpu as pltpu


def _pa_kernel(x_ref, w_ref, b_ref, o_ref):
    """Fused 1x1-conv -> sigmoid -> gate for one lane tile.

    x_ref : (R, T)  input rows (R = N*C), lane-dense tile of H*W
    w_ref : (R, R)  block-diagonal 1x1-conv weight, kron(I_N, W)
    b_ref : (R, 1)  per-row bias (conv bias tiled over batch)
    o_ref : (R, T)  output tile
    """
    x = x_ref[...]
    y = jnp.dot(w_ref[...], x, preferred_element_type=jnp.float32)
    y = y + b_ref[...]                       # (R, T) + (R, 1) lane broadcast
    o_ref[...] = (x * jax.nn.sigmoid(y)).astype(o_ref.dtype)


def pa_pallas(x_nchw, w, b):
    """PA forward.  x_nchw: (N, C, H, W); w: (Cout, Cin); b: (Cout,)."""
    N, C, H, W = x_nchw.shape
    HW = H * W
    R = N * C

    # Free reshape: rows = (n, c), columns = flattened spatial (lane axis).
    x2 = x_nchw.reshape(R, HW)

    # Fold the batch into one matmul: block-diagonal weight + tiled bias.
    # (R x R is tiny for PAN-style nf; for very large N*C one would switch
    #  back to a batch grid axis instead.)
    w_bd = jnp.kron(jnp.eye(N, dtype=w.dtype), w)        # (R, R)
    b_bd = jnp.tile(b, N).reshape(R, 1)                  # (R, 1)

    # Lane tile over H*W: biggest multiple-of-128 divisor (capped at 4096) so
    # the demo runs in one grid step but large images still tile/pipeline.
    if HW % 128 == 0:
        t = 128
        while t * 2 <= min(HW, 4096) and HW % (t * 2) == 0:
            t *= 2
    else:
        t = HW                                           # single full block
    grid = (HW // t,)

    out2 = pl.pallas_call(
        _pa_kernel,
        out_shape=jax.ShapeDtypeStruct((R, HW), x_nchw.dtype),
        grid_spec=pltpu.PrefetchScalarGridSpec(
            num_scalar_prefetch=0,
            grid=grid,
            in_specs=[
                pl.BlockSpec((R, t), lambda i: (0, i)),   # activations
                pl.BlockSpec((R, R), lambda i: (0, 0)),   # block-diag weight
                pl.BlockSpec((R, 1), lambda i: (0, 0)),   # bias
            ],
            out_specs=pl.BlockSpec((R, t), lambda i: (0, i)),
        ),
        compiler_params=pltpu.CompilerParams(
            dimension_semantics=("parallel",)),
    )(x2, w_bd, b_bd)

    return out2.reshape(N, C, H, W)


def pa_reference(x, w, b):
    """Pure-JAX reference: y = sigmoid(1x1 conv(x)); out = x * y."""
    y = jnp.einsum("oc,nchw->nohw", w, x) + b[None, :, None, None]
    return x * jax.nn.sigmoid(y)


if __name__ == "__main__":
    # Small, deterministic setup consistent with PA(nf=4).
    nf = 4
    N, H, W = 2, 16, 16

    key = jax.random.PRNGKey(0)
    kx, kw, kb = jax.random.split(key, 3)

    x = jax.random.normal(kx, (N, nf, H, W), dtype=jnp.float32)
    # nn.Conv2d(nf, nf, 1) weight (Cout, Cin, 1, 1) squeezed to (Cout, Cin).
    w = jax.random.normal(kw, (nf, nf), dtype=jnp.float32) * 0.2
    b = jax.random.normal(kb, (nf,), dtype=jnp.float32) * 0.1

    out = jax.block_until_ready(pa_pallas(x, w, b))
    ref = jax.block_until_ready(pa_reference(x, w, b))

    assert out.shape == (N, nf, H, W)
    assert jnp.allclose(out, ref, atol=1e-4, rtol=1e-4), float(
        jnp.max(jnp.abs(out - ref)))
    print("KERNEL_OK")
</pallas_src>

<mosaic_0001>
module attributes {stable_mosaic.version = 11 : i64} {
  func.func @_pa_kernel(%arg0: i32, %arg1: memref<8x256xf32, #tpu.memory_space<vmem>>, %arg2: memref<8x8xf32, #tpu.memory_space<vmem>>, %arg3: memref<8x1xf32, #tpu.memory_space<vmem>>, %arg4: memref<8x256xf32, #tpu.memory_space<vmem>>) attributes {dimension_semantics = [#tpu.dimension_semantics<parallel>], iteration_bounds = array<i64: 1>, scalar_prefetch = 0 : i64, scratch_operands = 0 : i64, tpu.core_type = #tpu.core_type<tc>, window_params = [{transform_indices = @transform_0, window_bounds = array<i64: 8, 256>}, {pipeline_mode = #tpu.pipeline_mode<synchronous>, transform_indices = @transform_1, window_bounds = array<i64: 8, 8>}, {pipeline_mode = #tpu.pipeline_mode<synchronous>, transform_indices = @transform_2, window_bounds = array<i64: 8, 1>}, {transform_indices = @transform_3, window_bounds = array<i64: 8, 256>}]} {
    %c0 = arith.constant 0 : index
    %c0_0 = arith.constant 0 : index
    %0 = vector.load %arg1[%c0, %c0_0] : memref<8x256xf32, #tpu.memory_space<vmem>>, vector<8x256xf32>
    %c0_1 = arith.constant 0 : index
    %c0_2 = arith.constant 0 : index
    %1 = vector.load %arg2[%c0_1, %c0_2] : memref<8x8xf32, #tpu.memory_space<vmem>>, vector<8x8xf32>
    %cst = arith.constant dense<0.000000e+00> : vector<8x256xf32>
    %2 = tpu.matmul %1, %0, %cst {dimension_numbers = #tpu.dot_dimension_numbers<[1], [0], [0], [1], [0, 0, 1, 1], [], []>} : vector<8x8xf32>, vector<8x256xf32>, vector<8x256xf32> -> vector<8x256xf32>
    %c0_3 = arith.constant 0 : index
    %c0_4 = arith.constant 0 : index
    %3 = vector.load %arg3[%c0_3, %c0_4] : memref<8x1xf32, #tpu.memory_space<vmem>>, vector<8x1xf32>
    %4 = vector.broadcast %3 : vector<8x1xf32> to vector<8x256xf32>
    %5 = arith.addf %2, %4 : vector<8x256xf32>
    %6 = arith.negf %5 : vector<8x256xf32>
    %7 = math.exp %6 : vector<8x256xf32>
    %cst_5 = arith.constant 1.000000e+00 : f32
    %8 = vector.broadcast %cst_5 : f32 to vector<8x256xf32>
    %9 = arith.addf %8, %7 : vector<8x256xf32>
    %10 = arith.divf %8, %9 : vector<8x256xf32>
    %11 = arith.mulf %0, %10 : vector<8x256xf32>
    %c0_6 = arith.constant 0 : index
    %c0_7 = arith.constant 0 : index
    %12 = vector.load %arg4[%c0_6, %c0_7] : memref<8x256xf32, #tpu.memory_space<vmem>>, vector<8x256xf32>
    tpu.vector_store %arg4[%c0_6, %c0_7], %11 {strides = array<i32>} : memref<8x256xf32, #tpu.memory_space<vmem>>, vector<8x256xf32>,
    return
  }
  func.func @transform_0(%arg0: i32) -> (i32, i32) {
    %c0_i32 = arith.constant 0 : i32
    %c0_i32_0 = arith.constant 0 : i32
    return %c0_i32, %arg0 : i32, i32
  }
  func.func @transform_1(%arg0: i32) -> (i32, i32) {
    %c0_i32 = arith.constant 0 : i32
    %c0_i32_0 = arith.constant 0 : i32
    %c0_i32_1 = arith.constant 0 : i32
    return %c0_i32, %c0_i32_0 : i32, i32
  }
  func.func @transform_2(%arg0: i32) -> (i32, i32) {
    %c0_i32 = arith.constant 0 : i32
    %c0_i32_0 = arith.constant 0 : i32
    %c0_i32_1 = arith.constant 0 : i32
    return %c0_i32, %c0_i32_0 : i32, i32
  }
  func.func @transform_3(%arg0: i32) -> (i32, i32) {
    %c0_i32 = arith.constant 0 : i32
    %c0_i32_0 = arith.constant 0 : i32
    return %c0_i32, %arg0 : i32, i32
  }
}

</mosaic_0001>

<llo_original>
// kernel: tpu_custom_call.1
$region0: #{tpu_custom_call.1}
  #allocation0 [shape = 'u32[]', space=smem, size = 0x4, offset = 0x4, fixed_abs, tag = 'smem constant byte address 0x4 - core index']
  #allocation1 [shape = 'u32[144,128]{1,0:T(1,128)}', space=vmem, size = 0x12000, scoped, tag = 'internal scratch']
  %s0 = inlined_call_operand.hbm [shape: f32[8,256], index: 0, kind: input, shape index: {}]
  %s1 = inlined_call_operand.vmem [shape: f32[8,8], index: 1, kind: input, shape index: {}]
  %s2 = inlined_call_operand.vmem [shape: f32[8,1], index: 2, kind: input, shape index: {}]
  %s3 = inlined_call_operand.hbm [shape: f32[8,256], index: 3, kind: output, shape index: {}]
  %s4 = sld [smem:[#allocation0]]
  $region26: #{tpu_custom_call.1} parent=0
    _
  %s6 = ssub.s32 1, %s4
  %s7 = scalar_select 0, %s6, %s4
  $region1: #{tpu_custom_call.1} parent=0
    #allocation2 [shape = 'u8[8192]{0}', space=vmem, size = 0x2000, scoped, tag = 'input window, operand 0, single buffered']
    #allocation3 [shape = 's32[1]{0}', space=sflag, size = 0x4, scoped, tag = 'scoped memory for tpu_custom_call.1']
    #allocation4 [shape = 's32[1]{0}', space=sflag, size = 0x4, scoped, tag = 'scoped memory for tpu_custom_call.1']
    #allocation5 [shape = 'u8[8192]{0}', space=vmem, size = 0x2000, scoped, tag = 'output window, operand 0, single buffered']
    %8 = vsyncpa [#allocation3], 0
    %9 = vsyncpa [#allocation4], 0
    // Predicated region
    $region2: #{tpu_custom_call.1} parent=1 // pred_check
      _
    $region3: #{tpu_custom_call.1} parent=1 // pred_check_branch
      %11 = sbr.rel (0) target = $region5
    $region4: #{tpu_custom_call.1} parent=1 // pred_region
      %s13 = ssub.s32 256, 256
      %14 = vsyncadd [#allocation3], %s13
      %s16 = sshll.u32 [#allocation2], 4
      %s17 = int_to_ptr.vmem [resolvable:$true] %s16
      %19 = dma.hbm_to_vmem [thread:$0]  %s0, 256, %s17, [#allocation3]
    $region5: #{tpu_custom_call.1} parent=1 // pred_fallthru
      _
    // Predicated region
    $region6: #{tpu_custom_call.1} parent=1 // pred_check
      _
    $region7: #{tpu_custom_call.1} parent=1 // pred_check_branch
      %21 = sbr.rel (0) target = $region9
    $region8: #{tpu_custom_call.1} parent=1 // pred_region
      _
    $region9: #{tpu_custom_call.1} parent=1 // pred_fallthru
      _
    // Predicated region
    $region10: #{tpu_custom_call.1} parent=1 // pred_check
      _
    $region11: #{tpu_custom_call.1} parent=1 // pred_check_branch
      %23 = sbr.rel (0) target = $region13
    $region12: #{tpu_custom_call.1} parent=1 // pred_region
      _
    $region13: #{tpu_custom_call.1} parent=1 // pred_fallthru
      _
    // Predicated region
    $region14: #{tpu_custom_call.1} parent=1 // pred_check
      _
    $region15: #{tpu_custom_call.1} parent=1 // pred_check_branch
      %25 = sbr.rel (0) target = $region17
    $region16: #{tpu_custom_call.1} parent=1 // pred_region
      %26 = dma.done [#allocation3], 256
    $region17: #{tpu_custom_call.1} parent=1 // pred_fallthru
      _
    %v27 = vld [vmem:[#allocation2] sm:$0xff]
    %v28 = vld [vmem:[#allocation2 + $0x8] sm:$0xff]
    %v29 = vld [vmem:[%s1] sm:$0xff]
    %v30 = vld [vmem:[%s2] sm:$0xff]
    %32 = vset.pattern.permute.xlu0 0
    %33 = vperm.xlu0 %32, %v30
    %v34 = vpop.permute.xlu0 %33
    %vm36 = vcmask 64512
    %v38 = vsel %vm36, %v29, 0
    %40 = vmatprep.subr.mxu0 0.0
    %41 = vmatpush1.msra.mxu0 0.0
    %42 = vmatprep.subr.mxu0 0.0
    %43 = vmatpush1.msra.mxu0 0.0
    %44 = vmatprep.subr.mxu0 0.0
    %45 = vmatpush1.msra.mxu0 0.0
    %46 = vmatprep.subr.mxu0 0.0
    %47 = vmatpush1.msra.mxu0 0.0
    %48 = vmatprep.subr.mxu0 0.0
    %49 = vmatpush1.msra.mxu0 0.0
    %50 = vmatprep.subr.mxu0 0.0
    %51 = vmatpush1.msra.mxu0 0.0
    %52 = vmatprep.subr.mxu0 0.0
    %53 = vmatpush1.msra.mxu0 0.0
    %54 = vmatprep.subr.mxu0 0.0
    %55 = vmatpush1.msra.mxu0 0.0
    %56 = vmatprep.subr.mxu0 0.0
    %57 = vmatpush1.msra.mxu0 0.0
    %58 = vmatprep.subr.mxu0 0.0
    %59 = vmatpush1.msra.mxu0 0.0
    %60 = vmatprep.subr.mxu0 0.0
    %61 = vmatpush1.msra.mxu0 0.0
    %62 = vmatprep.subr.mxu0 0.0
    %63 = vmatpush1.msra.mxu0 0.0
    %64 = vmatprep.subr.mxu0 0.0
    %65 = vmatpush1.msra.mxu0 0.0
    %66 = vmatprep.subr.mxu0 0.0
    %67 = vmatpush1.msra.mxu0 0.0
    %68 = vmatprep.subr.mxu0 0.0
    %69 = vmatpush1.msra.mxu0 0.0
    %70 = vmatprep.subr.mxu0 %v28
    %71 = vmatpush1.msra.mxu0 %v27
    %72 = vmatprep.subr.mxu0 0.0
    %73 = vmatpush2.msra.mxu0 0.0
    %74 = vmatprep.subr.mxu0 0.0
    %75 = vmatpush2.msra.mxu0 0.0
    %76 = vmatprep.subr.mxu0 0.0
    %77 = vmatpush2.msra.mxu0 0.0
    %78 = vmatprep.subr.mxu0 0.0
    %79 = vmatpush2.msra.mxu0 0.0
    %80 = vmatprep.subr.mxu0 0.0
    %81 = vmatpush2.msra.mxu0 0.0
    %82 = vmatprep.subr.mxu0 0.0
    %83 = vmatpush2.msra.mxu0 0.0
    %84 = vmatprep.subr.mxu0 0.0
    %85 = vmatpush2.msra.mxu0 0.0
    %86 = vmatprep.subr.mxu0 0.0
    %87 = vmatpush2.msra.mxu0 0.0
    %88 = vmatprep.subr.mxu0 0.0
    %89 = vmatpush2.msra.mxu0 0.0
    %90 = vmatprep.subr.mxu0 0.0
    %91 = vmatpush2.msra.mxu0 0.0
    %92 = vmatprep.subr.mxu0 0.0
    %93 = vmatpush2.msra.mxu0 0.0
    %94 = vmatprep.subr.mxu0 0.0
    %95 = vmatpush2.msra.mxu0 0.0
    %96 = vmatprep.subr.mxu0 0.0
    %97 = vmatpush2.msra.mxu0 0.0
    %98 = vmatprep.subr.mxu0 0.0
    %99 = vmatpush2.msra.mxu0 0.0
    %100 = vmatprep.subr.mxu0 0.0
    %101 = vmatpush2.msra.mxu0 0.0
    %102 = vmatprep.subr.mxu0 0.0
    %103 = vmatpush2.msra.mxu0 0.0
    %104 = vmatprep.mubr.f32.mxu0 0.0
    %105 = vmatmul.mubr.f32.gmra.mxu0 %v38
    %v106 = vpop.f32.mrf.mxu0
    %v107 = vadd.f32 %v34, %v106
    %v108 = vpop.f32.mrf.mxu0
    %v109 = vadd.f32 %v34, %v108
    %110 = vdwg.mxu0
    %v111 = vxor.u32 %v107, 2147483648
    %v112 = vxor.u32 %v109, 2147483648
    %v113 = vmul.f32 %v111, 1.442695
    %v114 = vpow.pop %v113
    %v115 = vmul.f32 %v112, 1.442695
    %v116 = vpow.pop %v115
    %v117 = vadd.f32 %v114, 1.0
    %v118 = vadd.f32 %v116, 1.0
    %v119 = vrcp.pop %v117
    %v120 = vmul.f32 1.0, %v119
    %v121 = vrcp.pop %v118
    %v122 = vmul.f32 1.0, %v121
    %v123 = vmul.f32 %v27, %v120
    %v124 = vmul.f32 %v28, %v122
    %125 = vst [vmem:[#allocation5] sm:$0xff] %v123
    %126 = vst [vmem:[#allocation5 + $0x8] sm:$0xff] %v124
    // Predicated region
    $region18: #{tpu_custom_call.1} parent=1 // pred_check
      _
    $region19: #{tpu_custom_call.1} parent=1 // pred_check_branch
      %128 = sbr.rel (0) target = $region21
    $region20: #{tpu_custom_call.1} parent=1 // pred_region
      %s130 = ssub.s32 256, 256
      %131 = vsyncadd [#allocation4], %s130
      %s133 = sshll.u32 [#allocation5], 4
      %s134 = int_to_ptr.vmem [resolvable:$true] %s133
      %136 = dma.vmem_to_hbm [thread:$0]  %s134, 256, %s3, [#allocation4]
    $region21: #{tpu_custom_call.1} parent=1 // pred_fallthru
      _
    // Predicated region
    $region22: #{tpu_custom_call.1} parent=1 // pred_check
      _
    $region23: #{tpu_custom_call.1} parent=1 // pred_check_branch
      %138 = sbr.rel (0) target = $region25
    $region24: #{tpu_custom_call.1} parent=1 // pred_region
      %139 = dma.done [#allocation4], 256
    $region25: #{tpu_custom_call.1} parent=1 // pred_fallthru
      _
    %140 = vsyncpa [#allocation3], 1
    %141 = vsyncpa [#allocation4], 1

</llo_original>
